<compile_context>
chip_gen: v7x
topology: tpu7x:2x2x1
jax: 0.10.0
libtpu: 0.0.40
codegen_flags: <defaults>
</compile_context>

<pallas_src>
import jax
import jax.numpy as jnp
import numpy as np
from jax.experimental import pallas as pl
from jax.experimental.pallas import tpu as pltpu


# --------------------------------------------------------------------------- #
# Kernels
# --------------------------------------------------------------------------- #

def _gelu_tanh(h):
    # tanh-approx GELU: 0.5*h*(1 + tanh(sqrt(2/pi)*(h + 0.044715*h^3)))
    # h is f32; tanh runs on the EUP (separate bundle slot).
    c = jnp.float32(0.7978845608028654)  # sqrt(2/pi)
    t = jnp.tanh(c * (h * (1.0 + 0.044715 * (h * h))))
    return h * (0.5 + 0.5 * t)


def _ffn_kernel_tiled(x_ref, w1_ref, b1_ref, w2_ref, b2_ref, o_ref, acc_ref):
    # x_ref:  (TM, D)      w1_ref: (D, TH)     b1_ref: (1, TH) f32
    # w2_ref: (TH, D)      b2_ref: (1, D) f32  o_ref:  (TM, D)
    # acc_ref: (TM, D) f32 accumulator, resident across the H (k) axis.
    k = pl.program_id(1)

    @pl.when(k == 0)
    def _():
        acc_ref[...] = jnp.zeros_like(acc_ref)

    # First linear (MXU) + bias, in f32.
    h = jnp.dot(x_ref[...], w1_ref[...], preferred_element_type=jnp.float32)
    h = h + b1_ref[...]

    g = _gelu_tanh(h)

    # Second linear (MXU): partial contribution of this H tile to the output.
    acc_ref[...] += jnp.dot(
        g.astype(w2_ref.dtype), w2_ref[...], preferred_element_type=jnp.float32
    )

    @pl.when(k == pl.num_programs(1) - 1)
    def _():
        o_ref[...] = (acc_ref[...] + b2_ref[...]).astype(o_ref.dtype)


def _ffn_kernel_resident(x_ref, w1_ref, b1_ref, w2_ref, b2_ref, o_ref):
    # Weights fully resident in VMEM; single pass per row tile.
    h = jnp.dot(x_ref[...], w1_ref[...], preferred_element_type=jnp.float32)
    h = h + b1_ref[...]
    g = _gelu_tanh(h)
    out = jnp.dot(g.astype(w2_ref.dtype), w2_ref[...],
                  preferred_element_type=jnp.float32) + b2_ref[...]
    o_ref[...] = out.astype(o_ref.dtype)


# --------------------------------------------------------------------------- #
# Tiling / chip configuration
# --------------------------------------------------------------------------- #

def _round_up(x, m):
    return ((x + m - 1) // m) * m


def _chip_config():
    """Per-generation tile caps, MXU granule and VMEM ceiling (per TensorCore)."""
    kind = ""
    try:
        kind = jax.devices()[0].device_kind.lower()
    except Exception:  # pragma: no cover - defensive
        pass
    if "v7" in kind:
        # 64 MiB VMEM per TC, 3.2 TB/s HBM -> ridge ~310 FLOP/B; 2 TCs (megacore).
        return dict(name="v7x", vmem_ceiling=56 << 20, tm_cap=512, th_cap=512,
                    granule=256, megacore=True)
    if "v6" in kind:
        # 128 MiB VMEM, 1.4 TB/s HBM -> ridge ~650 FLOP/B: need the biggest TM.
        return dict(name="v6e", vmem_ceiling=96 << 20, tm_cap=1024, th_cap=512,
                    granule=256, megacore=False)
    if "v5" in kind and ("lite" in kind or "5e" in kind):
        # 128 MiB VMEM, ~0.8 TB/s HBM -> ridge ~240 FLOP/B; 128x128 MXU.
        return dict(name="v5e", vmem_ceiling=100 << 20, tm_cap=512, th_cap=512,
                    granule=128, megacore=False)
    # Unknown (v4/v5p/interpret): conservative.
    return dict(name="generic", vmem_ceiling=48 << 20, tm_cap=512, th_cap=512,
                granule=128, megacore=False)


def _fast_path_budget(tm, D, H, in_b, w_b, out_b):
    # Double-buffered x/out, (double-counted) resident weights, f32 biases,
    # plus headroom for the (TM, H) f32 hidden intermediate.
    return (2 * tm * D * in_b
            + 2 * tm * D * out_b
            + 2 * (D * H + H * D) * w_b
            + 2 * (H + D) * 4
            + 2 * tm * H * 4)


def _tiled_budget(tm, th, D, in_b, w_b, out_b):
    # Double-buffered x/W1/W2/out/biases, single f32 accumulator, plus headroom
    # for the (TM, TH) f32 hidden intermediate.
    return (2 * tm * D * in_b
            + 2 * (D * th + th * D) * w_b
            + 2 * (th + D) * 4
            + 2 * tm * D * out_b
            + tm * D * 4
            + 2 * tm * th * 4)


def _choose_tiles_tiled(M, D, H, in_b, w_b, out_b, cfg):
    budget_cap = int(cfg["vmem_ceiling"] * 0.9)
    gran = cfg["granule"]
    th = max(128, min(cfg["th_cap"], _round_up(H, 128)))
    th = (th // 128) * 128
    tm = None
    while True:
        t = cfg["tm_cap"]
        while t >= gran:
            if _tiled_budget(t, th, D, in_b, w_b, out_b) <= budget_cap:
                tm = t
                break
            t -= gran
        if tm is not None or th <= 128:
            break
        th -= 128
    if tm is None:
        tm = gran  # last resort for extreme D; vmem_limit is raised anyway
    # Don't pad tiny batches up to a huge tile.
    tm = max(8, min(tm, _round_up(M, 8)))
    return tm, th


def _choose_tm_fast(M, D, H, in_b, w_b, out_b, cfg):
    budget_cap = int(cfg["vmem_ceiling"] * 0.9)
    gran = cfg["granule"]
    t = cfg["tm_cap"]
    while t > gran and _fast_path_budget(t, D, H, in_b, w_b, out_b) > budget_cap:
        t -= gran
    return max(8, min(t, _round_up(M, 8)))


# --------------------------------------------------------------------------- #
# Wrapper
# --------------------------------------------------------------------------- #

def feed_forward(x, w1, b1, w2, b2, *, compute_dtype=None):
    """x: (batch, seq, in_dim). w1: (D, H), b1: (H,), w2: (H, D), b2: (D,).

    compute_dtype: optional dtype for x/W1/W2 operands (e.g. jnp.bfloat16 for the
    bf16 MXU path).  Accumulation is always f32; output keeps x's original dtype.
    """
    B, S, D = x.shape
    H = w1.shape[1]
    M = B * S
    out_dtype = x.dtype

    cfg = _chip_config()

    if compute_dtype is not None:
        x = x.astype(compute_dtype)
        w1 = w1.astype(compute_dtype)
        w2 = w2.astype(compute_dtype)
    b1 = b1.astype(jnp.float32)
    b2 = b2.astype(jnp.float32)

    in_b = jnp.dtype(x.dtype).itemsize
    w_b = jnp.dtype(w1.dtype).itemsize
    out_b = jnp.dtype(out_dtype).itemsize

    x2d = x.reshape(M, D)
    b1_2d = b1.reshape(1, H)
    b2_2d = b2.reshape(1, D)

    flops = 4 * M * D * H          # two matmuls, 2*M*D*H each
    transcendentals = M * H        # one tanh per hidden element

    compiler_params = pltpu.CompilerParams  # alias

    # ---------------- weights-resident fast path ---------------- #
    weights_resident_bytes = 2 * (D * H + H * D) * w_b  # incl. double buffers
    if weights_resident_bytes <= cfg["vmem_ceiling"] // 3:
        TM = _choose_tm_fast(M, D, H, in_b, w_b, out_b, cfg)
        M_pad = _round_up(M, TM)
        if cfg["megacore"] and (M_pad // TM) > 1 and (M_pad // TM) % 2 == 1:
            M_pad += TM  # keep both v7x TensorCores evenly loaded
        if M_pad != M:
            x2d = jnp.pad(x2d, ((0, M_pad - M), (0, 0)))

        cost = pl.CostEstimate(
            flops=flops,
            transcendentals=transcendentals,
            bytes_accessed=(M_pad * D * in_b + (D * H + H * D) * w_b
                            + (H + D) * 4 + M_pad * D * out_b),
        )

        out = pl.pallas_call(
            _ffn_kernel_resident,
            out_shape=jax.ShapeDtypeStruct((M_pad, D), out_dtype),
            grid=(M_pad // TM,),
            in_specs=[
                pl.BlockSpec((TM, D), lambda i: (i, 0)),   # x: per row tile
                pl.BlockSpec((D, H), lambda i: (0, 0)),    # W1: resident
                pl.BlockSpec((1, H), lambda i: (0, 0)),    # b1: resident
                pl.BlockSpec((H, D), lambda i: (0, 0)),    # W2: resident
                pl.BlockSpec((1, D), lambda i: (0, 0)),    # b2: resident
            ],
            out_specs=pl.BlockSpec((TM, D), lambda i: (i, 0)),
            compiler_params=compiler_params(
                dimension_semantics=("parallel",),
                vmem_limit_bytes=int(cfg["vmem_ceiling"]),
            ),
            cost_estimate=cost,
        )(x2d, w1, b1_2d, w2, b2_2d)

        return out[:M].reshape(B, S, D)

    # ---------------- tiled-reduction path ---------------- #
    TM, TH = _choose_tiles_tiled(M, D, H, in_b, w_b, out_b, cfg)

    M_pad = _round_up(M, TM)
    if cfg["megacore"] and (M_pad // TM) > 1 and (M_pad // TM) % 2 == 1:
        M_pad += TM
    H_pad = _round_up(H, TH)

    if M_pad != M:
        x2d = jnp.pad(x2d, ((0, M_pad - M), (0, 0)))
    if H_pad != H:
        # Zero-padded hidden columns contribute exactly zero (gelu(0)=0, zero W2 rows).
        w1 = jnp.pad(w1, ((0, 0), (0, H_pad - H)))
        b1_2d = jnp.pad(b1_2d, ((0, 0), (0, H_pad - H)))
        w2 = jnp.pad(w2, ((0, H_pad - H), (0, 0)))

    num_m_tiles = M_pad // TM
    grid = (num_m_tiles, H_pad // TH)

    cost = pl.CostEstimate(
        flops=flops,
        transcendentals=transcendentals,
        # Weights ARE re-streamed once per row tile.
        bytes_accessed=(M_pad * D * in_b
                        + num_m_tiles * (D * H_pad + H_pad * D) * w_b
                        + (H_pad + D) * 4
                        + M_pad * D * out_b),
    )

    out = pl.pallas_call(
        _ffn_kernel_tiled,
        out_shape=jax.ShapeDtypeStruct((M_pad, D), out_dtype),
        grid=grid,
        in_specs=[
            pl.BlockSpec((TM, D), lambda i, k: (i, 0)),    # x: varies with row tile
            pl.BlockSpec((D, TH), lambda i, k: (0, k)),    # W1: varies with H tile
            pl.BlockSpec((1, TH), lambda i, k: (0, k)),    # b1
            pl.BlockSpec((TH, D), lambda i, k: (k, 0)),    # W2: varies with H tile
            pl.BlockSpec((1, D), lambda i, k: (0, 0)),     # b2: resident
        ],
        out_specs=pl.BlockSpec((TM, D), lambda i, k: (i, 0)),
        scratch_shapes=[pltpu.VMEM((TM, D), jnp.float32)],
        compiler_params=compiler_params(
            dimension_semantics=("parallel", "arbitrary"),
            vmem_limit_bytes=int(cfg["vmem_ceiling"]),
        ),
        cost_estimate=cost,
    )(x2d, w1, b1_2d, w2, b2_2d)

    return out[:M].reshape(B, S, D)


# --------------------------------------------------------------------------- #
# Reference + test
# --------------------------------------------------------------------------- #

def _reference(x, w1, b1, w2, b2):
    h = x @ w1 + b1
    g = 0.5 * h * (1.0 + jnp.tanh(jnp.sqrt(2.0 / jnp.pi) * (h + 0.044715 * h ** 3)))
    return g @ w2 + b2


if __name__ == "__main__":
    # Small shapes: batch=2, seq=8, in_dim=32 -> hidden = 4*32 = 128
    B, S, D = 2, 8, 32
    H = 4 * D

    key = jax.random.PRNGKey(0)
    kx, kw1, kb1, kw2, kb2 = jax.random.split(key, 5)

    x = jax.random.normal(kx, (B, S, D), dtype=jnp.float32)
    # PyTorch Linear init scale ~ U(-1/sqrt(fan_in), 1/sqrt(fan_in)); deterministic here.
    w1 = jax.random.uniform(kw1, (D, H), jnp.float32, -1.0 / np.sqrt(D), 1.0 / np.sqrt(D))
    b1 = jax.random.uniform(kb1, (H,), jnp.float32, -1.0 / np.sqrt(D), 1.0 / np.sqrt(D))
    w2 = jax.random.uniform(kw2, (H, D), jnp.float32, -1.0 / np.sqrt(H), 1.0 / np.sqrt(H))
    b2 = jax.random.uniform(kb2, (D,), jnp.float32, -1.0 / np.sqrt(H), 1.0 / np.sqrt(H))

    ref = _reference(x, w1, b1, w2, b2)

    # f32 operand path: tight tolerance.
    out = jax.block_until_ready(feed_forward(x, w1, b1, w2, b2))
    np.testing.assert_allclose(np.asarray(out), np.asarray(ref), rtol=1e-5, atol=1e-5)

    # bf16 operand path (MXU-friendly, halves HBM traffic): looser tolerance.
    out_bf16 = jax.block_until_ready(
        feed_forward(x, w1, b1, w2, b2, compute_dtype=jnp.bfloat16)
    )
    np.testing.assert_allclose(np.asarray(out_bf16), np.asarray(ref), rtol=3e-2, atol=3e-2)

    print("KERNEL_OK")
</pallas_src>

<mosaic_0001>
module attributes {stable_mosaic.version = 11 : i64} {
  func.func @_ffn_kernel_resident(%arg0: i32, %arg1: memref<16x32xf32, #tpu.memory_space<vmem>>, %arg2: memref<32x128xf32, #tpu.memory_space<vmem>>, %arg3: memref<1x128xf32, #tpu.memory_space<vmem>>, %arg4: memref<128x32xf32, #tpu.memory_space<vmem>>, %arg5: memref<1x32xf32, #tpu.memory_space<vmem>>, %arg6: memref<16x32xf32, #tpu.memory_space<vmem>>) attributes {dimension_semantics = [#tpu.dimension_semantics<parallel>], iteration_bounds = array<i64: 1>, scalar_prefetch = 0 : i64, scratch_operands = 0 : i64, tpu.core_type = #tpu.core_type<tc>, window_params = [{transform_indices = @transform_0, window_bounds = array<i64: 16, 32>}, {pipeline_mode = #tpu.pipeline_mode<synchronous>, transform_indices = @transform_1, window_bounds = array<i64: 32, 128>}, {pipeline_mode = #tpu.pipeline_mode<synchronous>, transform_indices = @transform_2, window_bounds = array<i64: 1, 128>}, {pipeline_mode = #tpu.pipeline_mode<synchronous>, transform_indices = @transform_3, window_bounds = array<i64: 128, 32>}, {pipeline_mode = #tpu.pipeline_mode<synchronous>, transform_indices = @transform_4, window_bounds = array<i64: 1, 32>}, {transform_indices = @transform_5, window_bounds = array<i64: 16, 32>}]} {
    %c0 = arith.constant 0 : index
    %c0_0 = arith.constant 0 : index
    %0 = vector.load %arg1[%c0, %c0_0] : memref<16x32xf32, #tpu.memory_space<vmem>>, vector<16x32xf32>
    %c0_1 = arith.constant 0 : index
    %c0_2 = arith.constant 0 : index
    %1 = vector.load %arg2[%c0_1, %c0_2] : memref<32x128xf32, #tpu.memory_space<vmem>>, vector<32x128xf32>
    %cst = arith.constant dense<0.000000e+00> : vector<16x128xf32>
    %2 = tpu.matmul %0, %1, %cst {dimension_numbers = #tpu.dot_dimension_numbers<[1], [0], [0], [1], [0, 0, 1, 1], [], []>} : vector<16x32xf32>, vector<32x128xf32>, vector<16x128xf32> -> vector<16x128xf32>
    %c0_3 = arith.constant 0 : index
    %c0_4 = arith.constant 0 : index
    %3 = vector.load %arg3[%c0_3, %c0_4] : memref<1x128xf32, #tpu.memory_space<vmem>>, vector<1x128xf32>
    %4 = vector.broadcast %3 : vector<1x128xf32> to vector<16x128xf32>
    %5 = arith.addf %2, %4 : vector<16x128xf32>
    %6 = arith.mulf %5, %5 : vector<16x128xf32>
    %cst_5 = arith.constant 4.471500e-02 : f32
    %7 = vector.broadcast %cst_5 : f32 to vector<16x128xf32>
    %8 = arith.mulf %7, %6 : vector<16x128xf32>
    %cst_6 = arith.constant 1.000000e+00 : f32
    %9 = vector.broadcast %cst_6 : f32 to vector<16x128xf32>
    %10 = arith.addf %9, %8 : vector<16x128xf32>
    %11 = arith.mulf %5, %10 : vector<16x128xf32>
    %cst_7 = arith.constant 0.797884583 : f32
    %12 = vector.broadcast %cst_7 : f32 to vector<16x128xf32>
    %13 = arith.mulf %12, %11 : vector<16x128xf32>
    %14 = math.tanh %13 : vector<16x128xf32>
    %cst_8 = arith.constant 5.000000e-01 : f32
    %15 = vector.broadcast %cst_8 : f32 to vector<16x128xf32>
    %16 = arith.mulf %15, %14 : vector<16x128xf32>
    %cst_9 = arith.constant 5.000000e-01 : f32
    %17 = vector.broadcast %cst_9 : f32 to vector<16x128xf32>
    %18 = arith.addf %17, %16 : vector<16x128xf32>
    %19 = arith.mulf %5, %18 : vector<16x128xf32>
    %c0_10 = arith.constant 0 : index
    %c0_11 = arith.constant 0 : index
    %20 = vector.load %arg4[%c0_10, %c0_11] : memref<128x32xf32, #tpu.memory_space<vmem>>, vector<128x32xf32>
    %cst_12 = arith.constant dense<0.000000e+00> : vector<16x32xf32>
    %21 = tpu.matmul %19, %20, %cst_12 {dimension_numbers = #tpu.dot_dimension_numbers<[1], [0], [0], [1], [0, 0, 1, 1], [], []>} : vector<16x128xf32>, vector<128x32xf32>, vector<16x32xf32> -> vector<16x32xf32>
    %c0_13 = arith.constant 0 : index
    %c0_14 = arith.constant 0 : index
    %22 = vector.load %arg5[%c0_13, %c0_14] : memref<1x32xf32, #tpu.memory_space<vmem>>, vector<1x32xf32>
    %23 = vector.broadcast %22 : vector<1x32xf32> to vector<16x32xf32>
    %24 = arith.addf %21, %23 : vector<16x32xf32>
    %c0_15 = arith.constant 0 : index
    %c0_16 = arith.constant 0 : index
    %25 = vector.load %arg6[%c0_15, %c0_16] : memref<16x32xf32, #tpu.memory_space<vmem>>, vector<16x32xf32>
    tpu.vector_store %arg6[%c0_15, %c0_16], %24 {strides = array<i32>} : memref<16x32xf32, #tpu.memory_space<vmem>>, vector<16x32xf32>,
    return
  }
  func.func @transform_0(%arg0: i32) -> (i32, i32) {
    %c0_i32 = arith.constant 0 : i32
    %c0_i32_0 = arith.constant 0 : i32
    return %arg0, %c0_i32 : i32, i32
  }
  func.func @transform_1(%arg0: i32) -> (i32, i32) {
    %c0_i32 = arith.constant 0 : i32
    %c0_i32_0 = arith.constant 0 : i32
    %c0_i32_1 = arith.constant 0 : i32
    return %c0_i32, %c0_i32_0 : i32, i32
  }
  func.func @transform_2(%arg0: i32) -> (i32, i32) {
    %c0_i32 = arith.constant 0 : i32
    %c0_i32_0 = arith.constant 0 : i32
    %c0_i32_1 = arith.constant 0 : i32
    return %c0_i32, %c0_i32_0 : i32, i32
  }
  func.func @transform_3(%arg0: i32) -> (i32, i32) {
    %c0_i32 = arith.constant 0 : i32
    %c0_i32_0 = arith.constant 0 : i32
    %c0_i32_1 = arith.constant 0 : i32
    return %c0_i32, %c0_i32_0 : i32, i32
  }
  func.func @transform_4(%arg0: i32) -> (i32, i32) {
    %c0_i32 = arith.constant 0 : i32
    %c0_i32_0 = arith.constant 0 : i32
    %c0_i32_1 = arith.constant 0 : i32
    return %c0_i32, %c0_i32_0 : i32, i32
  }
  func.func @transform_5(%arg0: i32) -> (i32, i32) {
    %c0_i32 = arith.constant 0 : i32
    %c0_i32_0 = arith.constant 0 : i32
    return %arg0, %c0_i32 : i32, i32
  }
}

</mosaic_0001>

<llo_original>
// kernel: tpu_custom_call.1
$region0: #{tpu_custom_call.1}
  #allocation0 [shape = 'u32[]', space=smem, size = 0x4, offset = 0x4, fixed_abs, tag = 'smem constant byte address 0x4 - core index']
  #allocation1 [shape = 'u32[144,128]{1,0:T(1,128)}', space=vmem, size = 0x12000, scoped, tag = 'internal scratch']
  %s0 = inlined_call_operand.vmem [shape: f32[16,32], index: 0, kind: input, shape index: {}]
  %s1 = inlined_call_operand.vmem [shape: f32[32,128], index: 1, kind: input, shape index: {}]
  %s2 = inlined_call_operand.vmem [shape: f32[1,128], index: 2, kind: input, shape index: {}]
  %s3 = inlined_call_operand.vmem [shape: f32[128,32], index: 3, kind: input, shape index: {}]
  %s4 = inlined_call_operand.vmem [shape: f32[1,32], index: 4, kind: input, shape index: {}]
  %s5 = inlined_call_operand.hbm [shape: f32[16,32], index: 5, kind: output, shape index: {}]
  %s6 = sld [smem:[#allocation0]]
  $region30: #{tpu_custom_call.1} parent=0
    _
  %s8 = ssub.s32 1, %s6
  %s9 = scalar_select 0, %s8, %s6
  $region1: #{tpu_custom_call.1} parent=0
    #allocation2 [shape = 'u8[8192]{0}', space=vmem, size = 0x2000, scoped, tag = 'output window, operand 0, single buffered']
    #allocation3 [shape = 's32[1]{0}', space=sflag, size = 0x4, scoped, tag = 'scoped memory for tpu_custom_call.1']
    %10 = vsyncpa [#allocation3], 0
    // Predicated region
    $region2: #{tpu_custom_call.1} parent=1 // pred_check
      _
    $region3: #{tpu_custom_call.1} parent=1 // pred_check_branch
      %12 = sbr.rel (0) target = $region5
    $region4: #{tpu_custom_call.1} parent=1 // pred_region
      _
    $region5: #{tpu_custom_call.1} parent=1 // pred_fallthru
      _
    // Predicated region
    $region6: #{tpu_custom_call.1} parent=1 // pred_check
      _
    $region7: #{tpu_custom_call.1} parent=1 // pred_check_branch
      %14 = sbr.rel (0) target = $region9
    $region8: #{tpu_custom_call.1} parent=1 // pred_region
      _
    $region9: #{tpu_custom_call.1} parent=1 // pred_fallthru
      _
    // Predicated region
    $region10: #{tpu_custom_call.1} parent=1 // pred_check
      _
    $region11: #{tpu_custom_call.1} parent=1 // pred_check_branch
      %16 = sbr.rel (0) target = $region13
    $region12: #{tpu_custom_call.1} parent=1 // pred_region
      _
    $region13: #{tpu_custom_call.1} parent=1 // pred_fallthru
      _
    // Predicated region
    $region14: #{tpu_custom_call.1} parent=1 // pred_check
      _
    $region15: #{tpu_custom_call.1} parent=1 // pred_check_branch
      %18 = sbr.rel (0) target = $region17
    $region16: #{tpu_custom_call.1} parent=1 // pred_region
      _
    $region17: #{tpu_custom_call.1} parent=1 // pred_fallthru
      _
    // Predicated region
    $region18: #{tpu_custom_call.1} parent=1 // pred_check
      _
    $region19: #{tpu_custom_call.1} parent=1 // pred_check_branch
      %20 = sbr.rel (0) target = $region21
    $region20: #{tpu_custom_call.1} parent=1 // pred_region
      _
    $region21: #{tpu_custom_call.1} parent=1 // pred_fallthru
      _
    %v21 = vld [vmem:[%s0] sm:$0xff]
    %v22 = vld [vmem:[%s0 + $0x8] sm:$0xff]
    %v23 = vld [vmem:[%s1] sm:$0xff]
    %v24 = vld [vmem:[%s1 + $0x8] sm:$0xff]
    %v25 = vld [vmem:[%s1 + $0x10] sm:$0xff]
    %v26 = vld [vmem:[%s1 + $0x18] sm:$0xff]
    %v27 = vld [vmem:[%s2] sm:$0x1]
    %v29 = vlaneseq
    %v30 = vshrl.u32 %v29, 7
    %v31 = vsub.s32 0, %v30
    %v32 = vrot.slane %v27, %v31
    %vm34 = vcmask 261120
    %v36 = vsel %vm34, %v21, 0
    %v39 = vsel %vm34, %v22, 0
    %41 = vmatprep.subr.mxu0 0.0
    %42 = vmatpush1.msra.mxu0 %v23
    %43 = vmatprep.subr.mxu0 0.0
    %44 = vmatpush1.msra.mxu0 %v24
    %45 = vmatprep.subr.mxu0 0.0
    %46 = vmatpush1.msra.mxu0 %v25
    %47 = vmatprep.subr.mxu0 0.0
    %48 = vmatpush1.msra.mxu0 %v26
    %49 = vmatprep.subr.mxu0 0.0
    %50 = vmatpush1.msra.mxu0 0.0
    %51 = vmatprep.subr.mxu0 0.0
    %52 = vmatpush1.msra.mxu0 0.0
    %53 = vmatprep.subr.mxu0 0.0
    %54 = vmatpush1.msra.mxu0 0.0
    %55 = vmatprep.subr.mxu0 0.0
    %56 = vmatpush1.msra.mxu0 0.0
    %57 = vmatprep.subr.mxu0 0.0
    %58 = vmatpush1.msra.mxu0 0.0
    %59 = vmatprep.subr.mxu0 0.0
    %60 = vmatpush1.msra.mxu0 0.0
    %61 = vmatprep.subr.mxu0 0.0
    %62 = vmatpush1.msra.mxu0 0.0
    %63 = vmatprep.subr.mxu0 0.0
    %64 = vmatpush1.msra.mxu0 0.0
    %65 = vmatprep.subr.mxu0 0.0
    %66 = vmatpush1.msra.mxu0 0.0
    %67 = vmatprep.subr.mxu0 0.0
    %68 = vmatpush1.msra.mxu0 0.0
    %69 = vmatprep.subr.mxu0 0.0
    %70 = vmatpush1.msra.mxu0 0.0
    %71 = vmatprep.subr.mxu0 0.0
    %72 = vmatpush1.msra.mxu0 0.0
    %73 = vmatprep.subr.mxu0 0.0
    %74 = vmatpush1.msra.mxu0 0.0
    %75 = vmatprep.subr.mxu0 0.0
    %76 = vmatpush1.msra.mxu0 0.0
    %77 = vmatprep.subr.mxu0 0.0
    %78 = vmatpush1.msra.mxu0 0.0
    %79 = vmatprep.subr.mxu0 0.0
    %80 = vmatpush1.msra.mxu0 0.0
    %81 = vmatprep.subr.mxu0 0.0
    %82 = vmatpush1.msra.mxu0 0.0
    %83 = vmatprep.subr.mxu0 0.0
    %84 = vmatpush1.msra.mxu0 0.0
    %85 = vmatprep.subr.mxu0 0.0
    %86 = vmatpush1.msra.mxu0 0.0
    %87 = vmatprep.subr.mxu0 0.0
    %88 = vmatpush1.msra.mxu0 0.0
    %89 = vmatprep.subr.mxu0 0.0
    %90 = vmatpush1.msra.mxu0 0.0
    %91 = vmatprep.subr.mxu0 0.0
    %92 = vmatpush1.msra.mxu0 0.0
    %93 = vmatprep.subr.mxu0 0.0
    %94 = vmatpush1.msra.mxu0 0.0
    %95 = vmatprep.subr.mxu0 0.0
    %96 = vmatpush1.msra.mxu0 0.0
    %97 = vmatprep.subr.mxu0 0.0
    %98 = vmatpush1.msra.mxu0 0.0
    %99 = vmatprep.subr.mxu0 0.0
    %100 = vmatpush1.msra.mxu0 0.0
    %101 = vmatprep.subr.mxu0 0.0
    %102 = vmatpush1.msra.mxu0 0.0
    %103 = vmatprep.subr.mxu0 0.0
    %104 = vmatpush1.msra.mxu0 0.0
    %105 = vmatprep.mubr.f32.mxu0 0.0
    %106 = vmatmul.mubr.f32.gmra.mrb[0].mxu0 %v36
    %v107 = vpop.f32.mrb[0].mxu0
    %v108 = vadd.f32 %v32, %v107
    %v109 = vpop.f32.mrb[0].mxu0
    %110 = vmatprep.mubr.f32.mxu0 0.0
    %111 = vmatmul.mubr.f32.gmra.mrb[0].mxu0 %v39
    %v112 = vpop.f32.mrb[0].mxu0
    %v113 = vadd.f32 %v32, %v112
    %v114 = vpop.f32.mrb[0].mxu0
    %115 = vdwg.mxu0
    %v116 = vmul.f32 %v108, %v108
    %v117 = vmul.f32 %v113, %v113
    %v118 = vmul.f32 %v116, 0.044715
    %v119 = vmul.f32 %v117, 0.044715
    %v120 = vadd.f32 %v118, 1.0
    %v121 = vadd.f32 %v119, 1.0
    %v122 = vmul.f32 %v108, %v120
    %v123 = vmul.f32 %v113, %v121
    %v124 = vmul.f32 %v122, 0.7978846
    %v125 = vmul.f32 %v123, 0.7978846
    %v126 = vtanh.pop %v124
    %v127 = vtanh.pop %v125
    %v128 = vmul.f32 %v126, 0.5
    %v129 = vmul.f32 %v127, 0.5
    %v130 = vadd.f32 %v128, 0.5
    %v131 = vadd.f32 %v129, 0.5
    %v132 = vmul.f32 %v108, %v130
    %v133 = vmul.f32 %v113, %v131
    %v134 = vld [vmem:[%s3] sm:$0xff]
    %v135 = vld [vmem:[%s3 + $0x8] sm:$0xff]
    %v136 = vld [vmem:[%s3 + $0x10] sm:$0xff]
    %v137 = vld [vmem:[%s3 + $0x18] sm:$0xff]
    %v138 = vld [vmem:[%s3 + $0x20] sm:$0xff]
    %v139 = vld [vmem:[%s3 + $0x28] sm:$0xff]
    %v140 = vld [vmem:[%s3 + $0x30] sm:$0xff]
    %v141 = vld [vmem:[%s3 + $0x38] sm:$0xff]
    %v142 = vld [vmem:[%s3 + $0x40] sm:$0xff]
    %v143 = vld [vmem:[%s3 + $0x48] sm:$0xff]
    %v144 = vld [vmem:[%s3 + $0x50] sm:$0xff]
    %v145 = vld [vmem:[%s3 + $0x58] sm:$0xff]
    %v146 = vld [vmem:[%s3 + $0x60] sm:$0xff]
    %v147 = vld [vmem:[%s3 + $0x68] sm:$0xff]
    %v148 = vld [vmem:[%s3 + $0x70] sm:$0xff]
    %v149 = vld [vmem:[%s3 + $0x78] sm:$0xff]
    %v150 = vld [vmem:[%s4] sm:$0x1]
    %v152 = vlaneseq
    %v153 = vshrl.u32 %v152, 7
    %v154 = vsub.s32 0, %v153
    %v155 = vrot.slane %v150, %v154
    %157 = vmatprep.subr.mxu0 0.0
    %158 = vmatpush1.msra.mxu0 %v134
    %159 = vmatprep.subr.mxu0 0.0
    %160 = vmatpush1.msra.mxu0 %v135
    %161 = vmatprep.subr.mxu0 0.0
    %162 = vmatpush1.msra.mxu0 %v136
    %163 = vmatprep.subr.mxu0 0.0
    %164 = vmatpush1.msra.mxu0 %v137
    %165 = vmatprep.subr.mxu0 0.0
    %166 = vmatpush1.msra.mxu0 %v138
    %167 = vmatprep.subr.mxu0 0.0
    %168 = vmatpush1.msra.mxu0 %v139
    %169 = vmatprep.subr.mxu0 0.0
    %170 = vmatpush1.msra.mxu0 %v140
    %171 = vmatprep.subr.mxu0 0.0
    %172 = vmatpush1.msra.mxu0 %v141
    %173 = vmatprep.subr.mxu0 0.0
    %174 = vmatpush1.msra.mxu0 %v142
    %175 = vmatprep.subr.mxu0 0.0
    %176 = vmatpush1.msra.mxu0 %v143
    %177 = vmatprep.subr.mxu0 0.0
    %178 = vmatpush1.msra.mxu0 %v144
    %179 = vmatprep.subr.mxu0 0.0
    %180 = vmatpush1.msra.mxu0 %v145
    %181 = vmatprep.subr.mxu0 0.0
    %182 = vmatpush1.msra.mxu0 %v146
    %183 = vmatprep.subr.mxu0 0.0
    %184 = vmatpush1.msra.mxu0 %v147
    %185 = vmatprep.subr.mxu0 0.0
    %186 = vmatpush1.msra.mxu0 %v148
    %187 = vmatprep.subr.mxu0 0.0
    %188 = vmatpush1.msra.mxu0 %v149
    %189 = vmatprep.subr.mxu0 0.0
    %190 = vmatpush1.msra.mxu0 0.0
    %191 = vmatprep.subr.mxu0 0.0
    %192 = vmatpush1.msra.mxu0 0.0
    %193 = vmatprep.subr.mxu0 0.0
    %194 = vmatpush1.msra.mxu0 0.0
    %195 = vmatprep.subr.mxu0 0.0
    %196 = vmatpush1.msra.mxu0 0.0
    %197 = vmatprep.subr.mxu0 0.0
    %198 = vmatpush1.msra.mxu0 0.0
    %199 = vmatprep.subr.mxu0 0.0
    %200 = vmatpush1.msra.mxu0 0.0
    %201 = vmatprep.subr.mxu0 0.0
    %202 = vmatpush1.msra.mxu0 0.0
    %203 = vmatprep.subr.mxu0 0.0
    %204 = vmatpush1.msra.mxu0 0.0
    %205 = vmatprep.subr.mxu0 0.0
    %206 = vmatpush1.msra.mxu0 0.0
    %207 = vmatprep.subr.mxu0 0.0
    %208 = vmatpush1.msra.mxu0 0.0
    %209 = vmatprep.subr.mxu0 0.0
    %210 = vmatpush1.msra.mxu0 0.0
    %211 = vmatprep.subr.mxu0 0.0
    %212 = vmatpush1.msra.mxu0 0.0
    %213 = vmatprep.subr.mxu0 0.0
    %214 = vmatpush1.msra.mxu0 0.0
    %215 = vmatprep.subr.mxu0 0.0
    %216 = vmatpush1.msra.mxu0 0.0
    %217 = vmatprep.subr.mxu0 0.0
    %218 = vmatpush1.msra.mxu0 0.0
    %219 = vmatprep.subr.mxu0 0.0
    %220 = vmatpush1.msra.mxu0 0.0
    %221 = vmatprep.mubr.f32.mxu0 0.0
    %222 = vmatmul.mubr.f32.gmra.mrb[0].mxu0 %v132
    %v223 = vpop.f32.mrb[0].mxu0
    %v224 = vadd.f32 %v155, %v223
    %v225 = vpop.f32.mrb[0].mxu0
    %226 = vmatprep.mubr.f32.mxu0 0.0
    %227 = vmatmul.mubr.f32.gmra.mrb[0].mxu0 %v133
    %v228 = vpop.f32.mrb[0].mxu0
    %v229 = vadd.f32 %v155, %v228
    %v230 = vpop.f32.mrb[0].mxu0
    %231 = vdwg.mxu0
    %232 = vst.msk [vmem:[#allocation2] sm:$0xff] %vm34, %v224
    %233 = vst.msk [vmem:[#allocation2 + $0x8] sm:$0xff] %vm34, %v229
    // Predicated region
    $region22: #{tpu_custom_call.1} parent=1 // pred_check
      _
    $region23: #{tpu_custom_call.1} parent=1 // pred_check_branch
      %235 = sbr.rel (0) target = $region25
    $region24: #{tpu_custom_call.1} parent=1 // pred_region
      %s237 = ssub.s32 256, 256
      %238 = vsyncadd [#allocation3], %s237
      %s239 = sshll.u32 [#allocation2], 4
      %s240 = int_to_ptr.vmem [resolvable:$true] %s239
      %245 = dma.vmem_to_hbm [thread:$0]  %s240, 256, %s5, [#allocation3], 128, 128, 8
    $region25: #{tpu_custom_call.1} parent=1 // pred_fallthru
      _
    // Predicated region
    $region26: #{tpu_custom_call.1} parent=1 // pred_check
      _
    $region27: #{tpu_custom_call.1} parent=1 // pred_check_branch
      %247 = sbr.rel (0) target = $region29
    $region28: #{tpu_custom_call.1} parent=1 // pred_region
      %248 = dma.done [#allocation3], 256
    $region29: #{tpu_custom_call.1} parent=1 // pred_fallthru
      _
    %249 = vsyncpa [#allocation3], 1

</llo_original>
